<compile_context>
chip_gen: v5e
topology: v5e:2x2
jax: 0.10.0
libtpu: 0.0.40
codegen_flags: <defaults>
</compile_context>

<pallas_src>
import math

import jax
import jax.numpy as jnp
from jax.experimental import pallas as pl
from jax.experimental.pallas import tpu as pltpu

STATE_DIM = 64
PI_DIM = 44 + 32 + 7          # 83
IN_DIM = STATE_DIM + PI_DIM   # 147
HIDDEN_DIMS = (64, 64)
OUT_DIM = 2 * STATE_DIM       # 128
LAMBDA_S = 1.5
TB_MAX = 2048                 # fits easily in VMEM even on v7x (64 MiB)


def _transition_kernel(x_ref, w1_ref, b1_ref, w2_ref, b2_ref, w3_ref, b3_ref, out_ref):
    # x_ref: [TB, IN_DIM] f32, weights bf16, biases f32, out_ref: [TB, OUT_DIM] f32
    x = x_ref[...].astype(jnp.bfloat16)   # cast in-kernel; hidden under the x DMA

    # hidden layer 1: Linear + ReLU  (Dropout == identity at inference)
    h1 = jnp.dot(x, w1_ref[...], preferred_element_type=jnp.float32) + b1_ref[...]
    h1 = jnp.maximum(h1, 0.0)

    # hidden layer 2: Linear + ReLU
    h2 = jnp.dot(h1.astype(jnp.bfloat16), w2_ref[...],
                 preferred_element_type=jnp.float32) + b2_ref[...]
    h2 = jnp.maximum(h2, 0.0)

    # output layer: Linear -> [TB, 2*state_dim]
    out = jnp.dot(h2.astype(jnp.bfloat16), w3_ref[...],
                  preferred_element_type=jnp.float32) + b3_ref[...]

    # Apply lambda_s * softplus to the std half (lanes >= STATE_DIM) without a lane
    # slice: elementwise select on the lane index keeps the 128-wide store lane-dense.
    lane = jax.lax.broadcasted_iota(jnp.int32, out.shape, dimension=1)
    std_act = LAMBDA_S * jnp.logaddexp(out, 0.0)      # softplus (EUP) in f32
    out_ref[...] = jnp.where(lane >= STATE_DIM, std_act, out)


def _choose_tb(batch):
    """Batch tile.

    Small batches: one block (rounded to 8).  Mid-size batches: split into two blocks
    so both v7x TensorCores get work.  Very large batches: cap at TB_MAX to amortize
    the per-grid-step overhead without blowing VMEM.
    """
    if batch <= 512:
        return max(8, pl.cdiv(batch, 8) * 8)
    if batch <= 2 * TB_MAX:
        return max(8, pl.cdiv(pl.cdiv(batch, 2), 8) * 8)
    return TB_MAX


def transition_forward(x, params):
    """x: [B, IN_DIM] float32 -> (mean [B, STATE_DIM], std [B, STATE_DIM])."""
    w1, b1, w2, b2, w3, b3 = params
    B = x.shape[0]

    tb = _choose_tb(B)
    nb = pl.cdiv(B, tb)

    cost = pl.CostEstimate(
        flops=2 * B * (IN_DIM * HIDDEN_DIMS[0]
                       + HIDDEN_DIMS[0] * HIDDEN_DIMS[1]
                       + HIDDEN_DIMS[1] * OUT_DIM),
        transcendentals=2 * B * OUT_DIM,               # softplus ~ exp + log per element
        bytes_accessed=(B * IN_DIM * 4                 # x (f32, read directly)
                        + (IN_DIM * 64 + 64 * 64 + 64 * OUT_DIM) * 2   # weights (bf16)
                        + (64 + 64 + OUT_DIM) * 4      # biases (f32)
                        + B * OUT_DIM * 4),            # output (f32)
    )

    resident = lambda shape: pl.BlockSpec(shape, lambda i: (0, 0))

    out = pl.pallas_call(
        _transition_kernel,
        grid=(nb,),
        out_shape=jax.ShapeDtypeStruct((B, OUT_DIM), jnp.float32),
        in_specs=[
            pl.BlockSpec((tb, IN_DIM), lambda i: (i, 0)),  # x tiled over batch (147 = full dim)
            resident(w1.shape), resident(b1.shape),        # weights/biases: VMEM-resident
            resident(w2.shape), resident(b2.shape),
            resident(w3.shape), resident(b3.shape),
        ],
        out_specs=pl.BlockSpec((tb, OUT_DIM), lambda i: (i, 0)),  # lane-dense 128-wide output
        compiler_params=pltpu.CompilerParams(
            dimension_semantics=("parallel",),             # megacore split on v7x
        ),
        cost_estimate=cost,
    )(x, w1, b1, w2, b2, w3, b3)

    mean = out[:, :STATE_DIM]
    std = out[:, STATE_DIM:]
    return mean, std


def _xavier_uniform(key, fan_in, fan_out, gain):
    bound = gain * math.sqrt(6.0 / (fan_in + fan_out))
    # PyTorch stores Linear weight as [out, in]; init that way then transpose so the
    # kernel multiplies x[B, in] @ W[in, out].
    w = jax.random.uniform(key, (fan_out, fan_in), jnp.float32, -bound, bound)
    return jnp.transpose(w)


def init_params(key):
    relu_gain = math.sqrt(2.0)   # nn.init.calculate_gain('relu')
    linear_gain = 1.0            # nn.init.calculate_gain('linear')
    k1, k2, k3 = jax.random.split(key, 3)

    w1 = _xavier_uniform(k1, IN_DIM, HIDDEN_DIMS[0], relu_gain).astype(jnp.bfloat16)
    b1 = jnp.zeros((1, HIDDEN_DIMS[0]), jnp.float32)

    w2 = _xavier_uniform(k2, HIDDEN_DIMS[0], HIDDEN_DIMS[1], relu_gain).astype(jnp.bfloat16)
    b2 = jnp.zeros((1, HIDDEN_DIMS[1]), jnp.float32)

    w3 = _xavier_uniform(k3, HIDDEN_DIMS[1], OUT_DIM, linear_gain).astype(jnp.bfloat16)
    b3 = jnp.zeros((1, OUT_DIM), jnp.float32)
    return w1, b1, w2, b2, w3, b3


def reference_forward(x, params):
    """Pure-JAX reference of the same math (bf16 matmuls, f32 accumulation)."""
    w1, b1, w2, b2, w3, b3 = params
    xb = x.astype(jnp.bfloat16)
    h1 = jnp.maximum(jnp.dot(xb, w1, preferred_element_type=jnp.float32) + b1, 0.0)
    h2 = jnp.maximum(
        jnp.dot(h1.astype(jnp.bfloat16), w2, preferred_element_type=jnp.float32) + b2, 0.0)
    out = jnp.dot(h2.astype(jnp.bfloat16), w3, preferred_element_type=jnp.float32) + b3
    mean = out[:, :STATE_DIM]
    std = LAMBDA_S * jnp.logaddexp(out[:, STATE_DIM:], 0.0)
    return mean, std


def _check(B, key):
    kp, kx = jax.random.split(key)
    params = init_params(kp)
    x = jax.random.normal(kx, (B, IN_DIM), jnp.float32)

    mean, std = jax.jit(transition_forward)(x, params)
    jax.block_until_ready((mean, std))

    ref_mean, ref_std = reference_forward(x, params)
    assert mean.shape == (B, STATE_DIM) and std.shape == (B, STATE_DIM)
    assert jnp.allclose(mean, ref_mean, atol=2e-3, rtol=2e-3)
    assert jnp.allclose(std, ref_std, atol=2e-3, rtol=2e-3)
    assert bool(jnp.all(std > 0.0))


if __name__ == "__main__":
    key = jax.random.PRNGKey(0)
    k0, k1 = jax.random.split(key)

    _check(8, k0)    # exact tile
    _check(13, k1)   # boundary-masked tile (B not a multiple of 8)

    print("KERNEL_OK")
</pallas_src>

<mosaic_0001>
module attributes {stable_mosaic.version = 11 : i64} {
  func.func @_transition_kernel(%arg0: i32, %arg1: memref<8x147xf32, #tpu.memory_space<vmem>>, %arg2: memref<147x64xbf16, #tpu.memory_space<vmem>>, %arg3: memref<1x64xf32, #tpu.memory_space<vmem>>, %arg4: memref<64x64xbf16, #tpu.memory_space<vmem>>, %arg5: memref<1x64xf32, #tpu.memory_space<vmem>>, %arg6: memref<64x128xbf16, #tpu.memory_space<vmem>>, %arg7: memref<1x128xf32, #tpu.memory_space<vmem>>, %arg8: memref<8x128xf32, #tpu.memory_space<vmem>>) attributes {dimension_semantics = [#tpu.dimension_semantics<parallel>], iteration_bounds = array<i64: 1>, scalar_prefetch = 0 : i64, scratch_operands = 0 : i64, tpu.core_type = #tpu.core_type<tc>, window_params = [{transform_indices = @transform_0, window_bounds = array<i64: 8, 147>}, {pipeline_mode = #tpu.pipeline_mode<synchronous>, transform_indices = @transform_1, window_bounds = array<i64: 147, 64>}, {pipeline_mode = #tpu.pipeline_mode<synchronous>, transform_indices = @transform_2, window_bounds = array<i64: 1, 64>}, {pipeline_mode = #tpu.pipeline_mode<synchronous>, transform_indices = @transform_3, window_bounds = array<i64: 64, 64>}, {pipeline_mode = #tpu.pipeline_mode<synchronous>, transform_indices = @transform_4, window_bounds = array<i64: 1, 64>}, {pipeline_mode = #tpu.pipeline_mode<synchronous>, transform_indices = @transform_5, window_bounds = array<i64: 64, 128>}, {pipeline_mode = #tpu.pipeline_mode<synchronous>, transform_indices = @transform_6, window_bounds = array<i64: 1, 128>}, {transform_indices = @transform_7, window_bounds = array<i64: 8, 128>}]} {
    %c0 = arith.constant 0 : index
    %c0_0 = arith.constant 0 : index
    %0 = vector.load %arg1[%c0, %c0_0] : memref<8x147xf32, #tpu.memory_space<vmem>>, vector<8x147xf32>
    %1 = arith.truncf %0 : vector<8x147xf32> to vector<8x147xbf16>
    %c0_1 = arith.constant 0 : index
    %c0_2 = arith.constant 0 : index
    %2 = vector.load %arg2[%c0_1, %c0_2] : memref<147x64xbf16, #tpu.memory_space<vmem>>, vector<147x64xbf16>
    %cst = arith.constant dense<0.000000e+00> : vector<8x64xf32>
    %3 = tpu.matmul %1, %2, %cst {dimension_numbers = #tpu.dot_dimension_numbers<[1], [0], [0], [1], [0, 0, 1, 1], [], []>} : vector<8x147xbf16>, vector<147x64xbf16>, vector<8x64xf32> -> vector<8x64xf32>
    %c0_3 = arith.constant 0 : index
    %c0_4 = arith.constant 0 : index
    %4 = vector.load %arg3[%c0_3, %c0_4] : memref<1x64xf32, #tpu.memory_space<vmem>>, vector<1x64xf32>
    %5 = vector.broadcast %4 : vector<1x64xf32> to vector<8x64xf32>
    %6 = arith.addf %3, %5 : vector<8x64xf32>
    %cst_5 = arith.constant 0.000000e+00 : f32
    %7 = vector.broadcast %cst_5 : f32 to vector<8x64xf32>
    %8 = arith.maximumf %6, %7 : vector<8x64xf32>
    %9 = arith.truncf %8 : vector<8x64xf32> to vector<8x64xbf16>
    %c0_6 = arith.constant 0 : index
    %c0_7 = arith.constant 0 : index
    %10 = vector.load %arg4[%c0_6, %c0_7] : memref<64x64xbf16, #tpu.memory_space<vmem>>, vector<64x64xbf16>
    %cst_8 = arith.constant dense<0.000000e+00> : vector<8x64xf32>
    %11 = tpu.matmul %9, %10, %cst_8 {dimension_numbers = #tpu.dot_dimension_numbers<[1], [0], [0], [1], [0, 0, 1, 1], [], []>} : vector<8x64xbf16>, vector<64x64xbf16>, vector<8x64xf32> -> vector<8x64xf32>
    %c0_9 = arith.constant 0 : index
    %c0_10 = arith.constant 0 : index
    %12 = vector.load %arg5[%c0_9, %c0_10] : memref<1x64xf32, #tpu.memory_space<vmem>>, vector<1x64xf32>
    %13 = vector.broadcast %12 : vector<1x64xf32> to vector<8x64xf32>
    %14 = arith.addf %11, %13 : vector<8x64xf32>
    %cst_11 = arith.constant 0.000000e+00 : f32
    %15 = vector.broadcast %cst_11 : f32 to vector<8x64xf32>
    %16 = arith.maximumf %14, %15 : vector<8x64xf32>
    %17 = arith.truncf %16 : vector<8x64xf32> to vector<8x64xbf16>
    %c0_12 = arith.constant 0 : index
    %c0_13 = arith.constant 0 : index
    %18 = vector.load %arg6[%c0_12, %c0_13] : memref<64x128xbf16, #tpu.memory_space<vmem>>, vector<64x128xbf16>
    %cst_14 = arith.constant dense<0.000000e+00> : vector<8x128xf32>
    %19 = tpu.matmul %17, %18, %cst_14 {dimension_numbers = #tpu.dot_dimension_numbers<[1], [0], [0], [1], [0, 0, 1, 1], [], []>} : vector<8x64xbf16>, vector<64x128xbf16>, vector<8x128xf32> -> vector<8x128xf32>
    %c0_15 = arith.constant 0 : index
    %c0_16 = arith.constant 0 : index
    %20 = vector.load %arg7[%c0_15, %c0_16] : memref<1x128xf32, #tpu.memory_space<vmem>>, vector<1x128xf32>
    %21 = vector.broadcast %20 : vector<1x128xf32> to vector<8x128xf32>
    %22 = arith.addf %19, %21 : vector<8x128xf32>
    %23 = tpu.iota {dimensions = array<i32: 1>} : vector<8x128xi32>
    %cst_17 = arith.constant 0.000000e+00 : f32
    %24 = vector.broadcast %cst_17 : f32 to vector<8x128xf32>
    %25 = arith.maximumf %22, %24 : vector<8x128xf32>
    %26 = vector.broadcast %cst_17 : f32 to vector<8x128xf32>
    %27 = arith.subf %22, %26 : vector<8x128xf32>
    %28 = arith.cmpf one, %27, %27 : vector<8x128xf32>
    %29 = vector.broadcast %cst_17 : f32 to vector<8x128xf32>
    %30 = arith.addf %22, %29 : vector<8x128xf32>
    %31 = math.absf %27 : vector<8x128xf32>
    %cst_18 = arith.constant 0.000000e+00 : f32
    %32 = vector.broadcast %cst_18 : f32 to vector<8x128xf32>
    %33 = arith.subf %32, %31 : vector<8x128xf32>
    %34 = math.exp %33 : vector<8x128xf32>
    %35 = math.log1p %34 : vector<8x128xf32>
    %36 = arith.addf %25, %35 : vector<8x128xf32>
    %37 = arith.select %28, %30, %36 : vector<8x128xi1>, vector<8x128xf32>
    %cst_19 = arith.constant 1.500000e+00 : f32
    %38 = vector.broadcast %cst_19 : f32 to vector<8x128xf32>
    %39 = arith.mulf %38, %37 : vector<8x128xf32>
    %c64_i32 = arith.constant 64 : i32
    %40 = vector.broadcast %c64_i32 : i32 to vector<8x128xi32>
    %41 = arith.cmpi sge, %23, %40 : vector<8x128xi32>
    %42 = arith.select %41, %39, %22 : vector<8x128xi1>, vector<8x128xf32>
    %c0_20 = arith.constant 0 : index
    %c0_21 = arith.constant 0 : index
    %43 = vector.load %arg8[%c0_20, %c0_21] : memref<8x128xf32, #tpu.memory_space<vmem>>, vector<8x128xf32>
    tpu.vector_store %arg8[%c0_20, %c0_21], %42 {strides = array<i32>} : memref<8x128xf32, #tpu.memory_space<vmem>>, vector<8x128xf32>,
    return
  }
  func.func @transform_0(%arg0: i32) -> (i32, i32) {
    %c0_i32 = arith.constant 0 : i32
    %c0_i32_0 = arith.constant 0 : i32
    return %arg0, %c0_i32 : i32, i32
  }
  func.func @transform_1(%arg0: i32) -> (i32, i32) {
    %c0_i32 = arith.constant 0 : i32
    %c0_i32_0 = arith.constant 0 : i32
    %c0_i32_1 = arith.constant 0 : i32
    return %c0_i32, %c0_i32_0 : i32, i32
  }
  func.func @transform_2(%arg0: i32) -> (i32, i32) {
    %c0_i32 = arith.constant 0 : i32
    %c0_i32_0 = arith.constant 0 : i32
    %c0_i32_1 = arith.constant 0 : i32
    return %c0_i32, %c0_i32_0 : i32, i32
  }
  func.func @transform_3(%arg0: i32) -> (i32, i32) {
    %c0_i32 = arith.constant 0 : i32
    %c0_i32_0 = arith.constant 0 : i32
    %c0_i32_1 = arith.constant 0 : i32
    return %c0_i32, %c0_i32_0 : i32, i32
  }
  func.func @transform_4(%arg0: i32) -> (i32, i32) {
    %c0_i32 = arith.constant 0 : i32
    %c0_i32_0 = arith.constant 0 : i32
    %c0_i32_1 = arith.constant 0 : i32
    return %c0_i32, %c0_i32_0 : i32, i32
  }
  func.func @transform_5(%arg0: i32) -> (i32, i32) {
    %c0_i32 = arith.constant 0 : i32
    %c0_i32_0 = arith.constant 0 : i32
    %c0_i32_1 = arith.constant 0 : i32
    return %c0_i32, %c0_i32_0 : i32, i32
  }
  func.func @transform_6(%arg0: i32) -> (i32, i32) {
    %c0_i32 = arith.constant 0 : i32
    %c0_i32_0 = arith.constant 0 : i32
    %c0_i32_1 = arith.constant 0 : i32
    return %c0_i32, %c0_i32_0 : i32, i32
  }
  func.func @transform_7(%arg0: i32) -> (i32, i32) {
    %c0_i32 = arith.constant 0 : i32
    %c0_i32_0 = arith.constant 0 : i32
    return %arg0, %c0_i32 : i32, i32
  }
}

</mosaic_0001>

<llo_original>
// kernel: transition_forward.1
$region0: #{transition_forward.1}
  #allocation0 [shape = 'u32[]', space=smem, size = 0x4, offset = 0x4, fixed_abs, tag = 'smem constant byte address 0x4 - core index']
  #allocation1 [shape = 'u32[72,128]{1,0:T(1,128)}', space=vmem, size = 0x9000, scoped, tag = 'internal scratch']
  %s0 = inlined_call_operand.vmem [shape: f32[8,147], index: 0, kind: input, shape index: {}]
  %s1 = inlined_call_operand.vmem [shape: bf16[147,64], index: 1, kind: input, shape index: {}]
  %s2 = inlined_call_operand.vmem [shape: f32[1,64], index: 2, kind: input, shape index: {}]
  %s3 = inlined_call_operand.vmem [shape: bf16[64,64], index: 3, kind: input, shape index: {}]
  %s4 = inlined_call_operand.vmem [shape: f32[1,64], index: 4, kind: input, shape index: {}]
  %s5 = inlined_call_operand.vmem [shape: bf16[64,128], index: 5, kind: input, shape index: {}]
  %s6 = inlined_call_operand.vmem [shape: f32[1,128], index: 6, kind: input, shape index: {}]
  %s7 = inlined_call_operand.vmem [shape: f32[8,128], index: 7, kind: output, shape index: {}]
  %s8 = sld [smem:[#allocation0]]
  $region38: #{transition_forward.1} parent=0
    _
  %s10 = ssub.s32 1, %s8
  %s11 = scalar_select 0, %s10, %s8
  // Predicated region
  $region2: #{transition_forward.1} parent=0 // pred_check
    _
  $region3: #{transition_forward.1} parent=0 // pred_check_branch
    %13 = sbr.rel (0) target = $region5
  $region4: #{transition_forward.1} parent=0 // pred_region
    _
  $region5: #{transition_forward.1} parent=0 // pred_fallthru
    _
  // Predicated region
  $region6: #{transition_forward.1} parent=0 // pred_check
    _
  $region7: #{transition_forward.1} parent=0 // pred_check_branch
    %15 = sbr.rel (0) target = $region9
  $region8: #{transition_forward.1} parent=0 // pred_region
    _
  $region9: #{transition_forward.1} parent=0 // pred_fallthru
    _
  // Predicated region
  $region10: #{transition_forward.1} parent=0 // pred_check
    _
  $region11: #{transition_forward.1} parent=0 // pred_check_branch
    %17 = sbr.rel (0) target = $region13
  $region12: #{transition_forward.1} parent=0 // pred_region
    _
  $region13: #{transition_forward.1} parent=0 // pred_fallthru
    _
  // Predicated region
  $region14: #{transition_forward.1} parent=0 // pred_check
    _
  $region15: #{transition_forward.1} parent=0 // pred_check_branch
    %19 = sbr.rel (0) target = $region17
  $region16: #{transition_forward.1} parent=0 // pred_region
    _
  $region17: #{transition_forward.1} parent=0 // pred_fallthru
    _
  // Predicated region
  $region18: #{transition_forward.1} parent=0 // pred_check
    _
  $region19: #{transition_forward.1} parent=0 // pred_check_branch
    %21 = sbr.rel (0) target = $region21
  $region20: #{transition_forward.1} parent=0 // pred_region
    _
  $region21: #{transition_forward.1} parent=0 // pred_fallthru
    _
  // Predicated region
  $region22: #{transition_forward.1} parent=0 // pred_check
    _
  $region23: #{transition_forward.1} parent=0 // pred_check_branch
    %23 = sbr.rel (0) target = $region25
  $region24: #{transition_forward.1} parent=0 // pred_region
    _
  $region25: #{transition_forward.1} parent=0 // pred_fallthru
    _
  // Predicated region
  $region26: #{transition_forward.1} parent=0 // pred_check
    _
  $region27: #{transition_forward.1} parent=0 // pred_check_branch
    %25 = sbr.rel (0) target = $region29
  $region28: #{transition_forward.1} parent=0 // pred_region
    _
  $region29: #{transition_forward.1} parent=0 // pred_fallthru
    _
  %v27 = vld [vmem:[%s0] sm:$0xff]
  %v28 = vld [vmem:[%s0 + $0x8] sm:$0xff]
  %v29 = vpack.c.bf16 %v27, %v27
  %v30 = vpack.c.bf16 %v28, %v28
  %v31 = vld [vmem:[%s1] sm:$0xf]
  %v32 = vld [vmem:[%s1 + $0x4] sm:$0xf]
  %v33 = vld [vmem:[%s1 + $0x8] sm:$0xf]
  %v34 = vld [vmem:[%s1 + $0xc] sm:$0xf]
  %v35 = vld [vmem:[%s1 + $0x10] sm:$0xf]
  %v36 = vld [vmem:[%s1 + $0x14] sm:$0xf]
  %v37 = vld [vmem:[%s1 + $0x18] sm:$0xf]
  %v38 = vld [vmem:[%s1 + $0x1c] sm:$0xf]
  %v39 = vld [vmem:[%s1 + $0x20] sm:$0xf]
  %v40 = vld [vmem:[%s1 + $0x24] sm:$0xf]
  %v41 = vld [vmem:[%s1 + $0x28] sm:$0xf]
  %v42 = vld [vmem:[%s1 + $0x2c] sm:$0xf]
  %v43 = vld [vmem:[%s1 + $0x30] sm:$0xf]
  %v44 = vld [vmem:[%s1 + $0x34] sm:$0xf]
  %v45 = vld [vmem:[%s1 + $0x38] sm:$0xf]
  %v46 = vld [vmem:[%s1 + $0x3c] sm:$0xf]
  %v47 = vld [vmem:[%s1 + $0x40] sm:$0xf]
  %v48 = vld [vmem:[%s1 + $0x44] sm:$0xf]
  %v49 = vld [vmem:[%s1 + $0x48] sm:$0x3]
  %v50 = vld [vmem:[%s2] sm:$0x1]
  %v52 = vperm.slane %v50, 0
  %v73 = vunpack.c.l.b16 %v31
  %v74 = vunpack.c.l.b16 %v32
  %v75 = vunpack.c.l.b16 %v33
  %v76 = vunpack.c.l.b16 %v34
  %v77 = vunpack.c.l.b16 %v35
  %v78 = vunpack.c.l.b16 %v36
  %v79 = vunpack.c.l.b16 %v37
  %v80 = vunpack.c.l.b16 %v38
  %v81 = vunpack.c.l.b16 %v39
  %v82 = vunpack.c.l.b16 %v40
  %v83 = vunpack.c.l.b16 %v41
  %v84 = vunpack.c.l.b16 %v42
  %v85 = vunpack.c.l.b16 %v43
  %v86 = vunpack.c.l.b16 %v44
  %v87 = vunpack.c.l.b16 %v45
  %v88 = vunpack.c.l.b16 %v46
  %v89 = vunpack.c.l.b16 %v47
  %v90 = vunpack.c.l.b16 %v48
  %v91 = vunpack.c.l.b16 %v49
  %v92 = vpack.c.b16 %v74, %v73
  %v93 = vpack.c.b16 %v76, %v75
  %v94 = vpack.c.b16 %v78, %v77
  %v95 = vpack.c.b16 %v80, %v79
  %v96 = vpack.c.b16 %v82, %v81
  %v97 = vpack.c.b16 %v84, %v83
  %v98 = vpack.c.b16 %v86, %v85
  %v99 = vpack.c.b16 %v88, %v87
  %v100 = vpack.c.b16 %v90, %v89
  %v101 = vpack.c.b16 %v91, %v91
  %vm111 = vcmask 154624
  %v113 = vsel %vm111, %v30, 0
  %vm115 = vcmask 1040384
  %vm116 = vcmask 1041408
  %v117 = vsel %vm115, 4294967295, 65535
  %v118 = vsel %vm116, %v117, 0
  %v120 = vand.u32 %v101, %v118
  %122 = vmatpush.bf16.msra.mxu0 %v99
  %123 = vmatpush.bf16.msra.mxu0 %v98
  %124 = vmatpush.bf16.msra.mxu0 %v97
  %125 = vmatpush.bf16.msra.mxu0 %v96
  %126 = vmatpush.bf16.msra.mxu0 %v95
  %127 = vmatpush.bf16.msra.mxu0 %v94
  %128 = vmatpush.bf16.msra.mxu0 %v93
  %129 = vmatpush.bf16.msra.mxu0 %v92
  %130 = vmatmul.bf16.gmra.mxu0 %v29
  %v131 = vpop.f32.mrf.mxu0
  %v132 = vadd.f32 %v52, %v131
  %v133 = vpop.f32.mrf.mxu0
  %134 = vdwg.mxu0
  %135 = vmatpush.bf16.msra.mxu0 0
  %136 = vmatpush.bf16.msra.mxu0 0
  %137 = vmatpush.bf16.msra.mxu0 0
  %138 = vmatpush.bf16.msra.mxu0 0
  %139 = vmatpush.bf16.msra.mxu0 0
  %140 = vmatpush.bf16.msra.mxu0 0
  %141 = vmatpush.bf16.msra.mxu0 %v120
  %142 = vmatpush.bf16.msra.mxu0 %v100
  %143 = vmatmul.bf16.gmra.mxu0 %v113
  %v144 = vpop.f32.mrf.mxu0
  %v145 = vadd.f32 %v132, %v144
  %v146 = vpop.f32.mrf.mxu0
  %147 = vdwg.mxu0
  %v148 = vmax.f32 %v145, 0.0
  %v149 = vpack.c.bf16 %v148, %v148
  %v150 = vld [vmem:[%s3] sm:$0xf]
  %v151 = vld [vmem:[%s3 + $0x4] sm:$0xf]
  %v152 = vld [vmem:[%s3 + $0x8] sm:$0xf]
  %v153 = vld [vmem:[%s3 + $0xc] sm:$0xf]
  %v154 = vld [vmem:[%s3 + $0x10] sm:$0xf]
  %v155 = vld [vmem:[%s3 + $0x14] sm:$0xf]
  %v156 = vld [vmem:[%s3 + $0x18] sm:$0xf]
  %v157 = vld [vmem:[%s3 + $0x1c] sm:$0xf]
  %v158 = vld [vmem:[%s4] sm:$0x1]
  %v160 = vperm.slane %v158, 0
  %v170 = vunpack.c.l.b16 %v150
  %v171 = vunpack.c.l.b16 %v151
  %v172 = vunpack.c.l.b16 %v152
  %v173 = vunpack.c.l.b16 %v153
  %v174 = vunpack.c.l.b16 %v154
  %v175 = vunpack.c.l.b16 %v155
  %v176 = vunpack.c.l.b16 %v156
  %v177 = vunpack.c.l.b16 %v157
  %v178 = vpack.c.b16 %v171, %v170
  %v179 = vpack.c.b16 %v173, %v172
  %v180 = vpack.c.b16 %v175, %v174
  %v181 = vpack.c.b16 %v177, %v176
  %vm186 = vcmask 523264
  %v188 = vsel %vm186, %v149, 0
  %190 = vmatpush.bf16.msra.mxu0 0
  %191 = vmatpush.bf16.msra.mxu0 0
  %192 = vmatpush.bf16.msra.mxu0 0
  %193 = vmatpush.bf16.msra.mxu0 0
  %194 = vmatpush.bf16.msra.mxu0 %v181
  %195 = vmatpush.bf16.msra.mxu0 %v180
  %196 = vmatpush.bf16.msra.mxu0 %v179
  %197 = vmatpush.bf16.msra.mxu0 %v178
  %198 = vmatmul.bf16.gmra.mxu0 %v188
  %v199 = vpop.f32.mrf.mxu0
  %v200 = vadd.f32 %v160, %v199
  %v201 = vpop.f32.mrf.mxu0
  %202 = vdwg.mxu0
  %v203 = vmax.f32 %v200, 0.0
  %v204 = vpack.c.bf16 %v203, %v203
  %v205 = vld [vmem:[%s5] sm:$0xf]
  %v206 = vld [vmem:[%s5 + $0x4] sm:$0xf]
  %v207 = vld [vmem:[%s5 + $0x8] sm:$0xf]
  %v208 = vld [vmem:[%s5 + $0xc] sm:$0xf]
  %v209 = vld [vmem:[%s5 + $0x10] sm:$0xf]
  %v210 = vld [vmem:[%s5 + $0x14] sm:$0xf]
  %v211 = vld [vmem:[%s5 + $0x18] sm:$0xf]
  %v212 = vld [vmem:[%s5 + $0x1c] sm:$0xf]
  %v213 = vld [vmem:[%s6] sm:$0x1]
  %v215 = vperm.slane %v213, 0
  %v225 = vunpack.c.l.b16 %v205
  %v226 = vunpack.c.l.b16 %v206
  %v227 = vunpack.c.l.b16 %v207
  %v228 = vunpack.c.l.b16 %v208
  %v229 = vunpack.c.l.b16 %v209
  %v230 = vunpack.c.l.b16 %v210
  %v231 = vunpack.c.l.b16 %v211
  %v232 = vunpack.c.l.b16 %v212
  %v233 = vpack.c.b16 %v226, %v225
  %v234 = vpack.c.b16 %v228, %v227
  %v235 = vpack.c.b16 %v230, %v229
  %v236 = vpack.c.b16 %v232, %v231
  %v242 = vsel %vm186, %v204, 0
  %244 = vmatpush.bf16.msra.mxu0 0
  %245 = vmatpush.bf16.msra.mxu0 0
  %246 = vmatpush.bf16.msra.mxu0 0
  %247 = vmatpush.bf16.msra.mxu0 0
  %248 = vmatpush.bf16.msra.mxu0 %v236
  %249 = vmatpush.bf16.msra.mxu0 %v235
  %250 = vmatpush.bf16.msra.mxu0 %v234
  %251 = vmatpush.bf16.msra.mxu0 %v233
  %252 = vmatmul.bf16.gmra.mxu0 %v242
  %v253 = vpop.f32.mrf.mxu0
  %v254 = vadd.f32 %v215, %v253
  %v255 = vpop.f32.mrf.mxu0
  %256 = vdwg.mxu0
  %v257 = vlaneseq
  %v258 = vand.u32 %v257, 127
  %v259 = vmax.f32 %v254, 0.0
  %vm260 = vcmp.ne.f32.partialorder %v254, %v254
  %v261 = vadd.f32 %v254, 0.0
  %v262 = vand.u32 2147483647, %v254
  %v263 = vsub.f32 0.0, %v262
  %v264 = vmul.f32 %v263, 1.442695
  %v265 = vpow.pop %v264
  %v266 = vadd.f32 %v265, 1.0
  %v267 = vlog2.pop %v266
  %v268 = vmul.f32 %v267, 0.6931472
  %v269 = vmul.f32 -0.5, %v265
  %v270 = vadd.f32 %v269, 1.0
  %v271 = vmul.f32 %v270, %v265
  %v272 = vand.u32 2147483647, %v265
  %vm273 = vcmp.lt.f32.partialorder %v272, 0.0004427343
  %v274 = vsel %vm273, %v271, %v268
  %v275 = vadd.f32 %v259, %v274
  %v276 = vsel %vm260, %v261, %v275
  %v277 = vmul.f32 %v276, 1.5
  %vm278 = vcmp.ge.s32.totalorder %v258, 64
  %v279 = vsel %vm278, %v277, %v254
  %280 = vst [vmem:[%s7] sm:$0xff] %v279
  // Predicated region
  $region30: #{transition_forward.1} parent=0 // pred_check
    _
  $region31: #{transition_forward.1} parent=0 // pred_check_branch
    %282 = sbr.rel (0) target = $region33
  $region32: #{transition_forward.1} parent=0 // pred_region
    _
  $region33: #{transition_forward.1} parent=0 // pred_fallthru
    _
  // Predicated region
  $region34: #{transition_forward.1} parent=0 // pred_check
    _
  $region35: #{transition_forward.1} parent=0 // pred_check_branch
    %284 = sbr.rel (0) target = $region37
  $region36: #{transition_forward.1} parent=0 // pred_region
    _
  $region37: #{transition_forward.1} parent=0 // pred_fallthru
    _

</llo_original>
